<compile_context>
chip_gen: v7x
topology: tpu7x:2x2x1
jax: 0.10.0
libtpu: 0.0.40
codegen_flags: <defaults>
</compile_context>

<pallas_src>
import functools
import math

import jax
import jax.numpy as jnp
from jax.experimental import pallas as pl
from jax.experimental.pallas import tpu as pltpu


def _round_up(x, m):
    return ((x + m - 1) // m) * m


def _packing(c):
    """Returns (pack, c_eff, cp): rows packed per vreg row, padded channel dim,
    and the lane-dense packed channel width cp = pack * c_eff (multiple of 128)."""
    if c < 128 and 128 % c == 0:
        pack, c_eff = 128 // c, c
    elif c % 128 == 0:
        pack, c_eff = 1, c
    else:
        pack, c_eff = 1, _round_up(c, 128)  # zero-pad channels -> lane-dense stores
    return pack, c_eff, pack * c_eff


def _angle_resnet_kernel(a_ref, w1_ref, b1_ref, w2_ref, b2_ref, o_ref):
    """One row-tile of an L-layer AngleResnetBlock stack.

    a_ref  : (TM, CP)      packed input activations (CP = pack * c_eff)
    wK_ref : (L, CP, CP)   block-diagonal bf16 weights, laid out [in, out]
    bK_ref : (L, 1,  CP)   f32 biases tiled `pack` times
    o_ref  : (TM, CP)      packed output
    """
    x = a_ref[...].astype(jnp.float32)
    num_layers = w1_ref.shape[0]
    for l in range(num_layers):          # static, small L -> unrolled
        s = x
        h = jnp.maximum(x, 0.0).astype(jnp.bfloat16)
        h = jnp.dot(h, w1_ref[l], preferred_element_type=jnp.float32) + b1_ref[l]
        h = jnp.maximum(h, 0.0).astype(jnp.bfloat16)
        h = jnp.dot(h, w2_ref[l], preferred_element_type=jnp.float32) + b2_ref[l]
        x = h + s                        # residual in f32
    o_ref[...] = x.astype(o_ref.dtype)


def pack_params(param_list):
    """Hoisted (once-per-parameter-set) weight preprocessing.

    param_list: list of dicts with torch-style "w1"/"w2" ([out, in]) and "b1"/"b2".
    Returns (w1p, b1p, w2p, b2p) stacked over layers, lane-packed, weights in bf16.
    """
    c = param_list[0]["w1"].shape[0]
    pack, c_eff, cp = _packing(c)

    def pack_w(w):
        w = jnp.asarray(w).T                                   # [in, out]
        if c_eff != c:
            w = jnp.pad(w, ((0, c_eff - c), (0, c_eff - c)))
        if pack > 1:
            w = jnp.kron(jnp.eye(pack, dtype=w.dtype), w)      # block-diagonal
        return w.astype(jnp.bfloat16)

    def pack_b(b):
        b = jnp.asarray(b).astype(jnp.float32)
        if c_eff != c:
            b = jnp.pad(b, (0, c_eff - c))
        return jnp.tile(b, pack).reshape(1, cp)

    w1p = jnp.stack([pack_w(p["w1"]) for p in param_list])
    b1p = jnp.stack([pack_b(p["b1"]) for p in param_list])
    w2p = jnp.stack([pack_w(p["w2"]) for p in param_list])
    b2p = jnp.stack([pack_b(p["b2"]) for p in param_list])
    return w1p, b1p, w2p, b2p


@functools.partial(jax.jit, static_argnames=("tm",))
def angle_resnet_blocks(a, w1p, b1p, w2p, b2p, tm=2048):
    """Apply a fused stack of AngleResnetBlocks to a: [..., c_hidden]."""
    c = a.shape[-1]
    lead = a.shape[:-1]
    n = int(math.prod(lead)) if lead else 1
    pack, c_eff, cp = _packing(c)
    assert w1p.shape[-1] == cp, "packed params do not match the input channel dim"
    num_layers = w1p.shape[0]

    # ---- tile / grid-depth selection (>= 8 steps when rows allow, >=1024-row tiles) ----
    rows = -(-n // pack)                                # packed logical rows
    target = max(1024, -(-rows // 8))
    tm_eff = min(tm, target, _round_up(rows, 8))
    tm_eff = _round_up(max(tm_eff, 8), 8)
    rows_padded = _round_up(rows, tm_eff)
    n_padded = rows_padded * pack
    grid = (rows_padded // tm_eff,)

    # ---- single pad pass (none at all when shapes already fit) ----
    a2 = a.reshape(n, c)
    pad_n, pad_c = n_padded - n, c_eff - c
    if pad_n or pad_c:
        a2 = jnp.pad(a2, ((0, pad_n), (0, pad_c)))
    a_packed = a2.reshape(rows_padded, cp)

    # ---- VMEM budget: double-buffered in/out blocks + weights + headroom, cap 48 MiB ----
    act_itemsize = jnp.dtype(a.dtype).itemsize
    block_bytes = tm_eff * cp * act_itemsize
    weight_bytes = num_layers * (2 * cp * cp * jnp.dtype(w1p.dtype).itemsize + 2 * cp * 4)
    vmem_needed = 2 * (2 * block_bytes) + 2 * weight_bytes + (4 << 20)
    vmem_limit = int(min(max(vmem_needed, 16 << 20), 48 << 20))

    cost = pl.CostEstimate(
        flops=int(num_layers * 2 * 2 * rows_padded * cp * cp),
        transcendentals=0,
        bytes_accessed=int(2 * rows_padded * cp * act_itemsize + weight_bytes),
    )

    row_spec = pl.BlockSpec((tm_eff, cp), lambda i: (i, 0))
    w_spec = pl.BlockSpec((num_layers, cp, cp), lambda i: (0, 0, 0))
    b_spec = pl.BlockSpec((num_layers, 1, cp), lambda i: (0, 0, 0))

    out_packed = pl.pallas_call(
        _angle_resnet_kernel,
        out_shape=jax.ShapeDtypeStruct((rows_padded, cp), a.dtype),
        grid_spec=pltpu.PrefetchScalarGridSpec(
            num_scalar_prefetch=0,
            grid=grid,
            in_specs=[row_spec, w_spec, b_spec, w_spec, b_spec],
            out_specs=row_spec,
        ),
        compiler_params=pltpu.CompilerParams(
            dimension_semantics=("parallel",),
            vmem_limit_bytes=vmem_limit,
        ),
        cost_estimate=cost,
    )(a_packed, w1p, b1p, w2p, b2p)

    out = out_packed.reshape(n_padded, c_eff)
    if pad_n or pad_c:
        out = out[:n, :c]
    return out.reshape(*lead, c)


def angle_resnet_block(a, params, tm=2048):
    """Single-block convenience wrapper matching the PyTorch module's forward."""
    return angle_resnet_blocks(a, *pack_params([params]), tm=tm)


# ---------------------------- references & demo ----------------------------

def _reference_f32(a, param_list):
    """Pure-JAX f32 reference matching PyTorch AngleResnetBlock.forward exactly."""
    x = a
    for p in param_list:
        s = x
        x = jnp.maximum(x, 0.0)
        x = x @ p["w1"].T + p["b1"]
        x = jnp.maximum(x, 0.0)
        x = x @ p["w2"].T + p["b2"]
        x = x + s
    return x


def _reference_bf16(a, param_list):
    """Reference with the same numerics as the kernel (bf16 MXU operands, f32 acc)."""
    x = a.astype(jnp.float32)
    for p in param_list:
        s = x
        h = jnp.maximum(x, 0.0).astype(jnp.bfloat16)
        h = jnp.dot(h, p["w1"].T.astype(jnp.bfloat16),
                    preferred_element_type=jnp.float32) + p["b1"]
        h = jnp.maximum(h, 0.0).astype(jnp.bfloat16)
        h = jnp.dot(h, p["w2"].T.astype(jnp.bfloat16),
                    preferred_element_type=jnp.float32) + p["b2"]
        x = h + s
    return x


def init_params(key, c):
    ks = jax.random.split(key, 4)
    lim = 1.0 / math.sqrt(c)
    return {
        "w1": jax.random.uniform(ks[0], (c, c), jnp.float32, -lim, lim),
        "b1": jax.random.uniform(ks[1], (c,), jnp.float32, -lim, lim),
        "w2": jax.random.uniform(ks[2], (c, c), jnp.float32, -lim, lim),
        "b2": jax.random.uniform(ks[3], (c,), jnp.float32, -lim, lim),
    }


if __name__ == "__main__":
    key = jax.random.PRNGKey(0)
    batch, seq, c_hidden = 2, 8, 32

    k_a, k_p = jax.random.split(key, 2)
    a = jax.random.normal(k_a, (batch, seq, c_hidden), jnp.float32)
    params = [init_params(k_p, c_hidden)]      # single AngleResnetBlock

    packed = pack_params(params)               # weight preprocessing hoisted out
    out = angle_resnet_blocks(a, *packed)
    out = jax.block_until_ready(out)

    assert out.shape == (batch, seq, c_hidden)
    # Strict check vs a reference with identical numerics (bf16 MXU operands, f32 acc).
    ref_strict = _reference_bf16(a, params)
    assert jnp.allclose(out, ref_strict, atol=1e-3, rtol=1e-3), "mismatch vs bf16 reference"
    # Loose sanity check vs the exact f32 PyTorch-equivalent forward.
    ref_f32 = _reference_f32(a, params)
    assert jnp.allclose(out, ref_f32, atol=5e-2, rtol=5e-2), "mismatch vs f32 reference"

    print("KERNEL_OK")
</pallas_src>

<mosaic_0001>
module attributes {stable_mosaic.version = 11 : i64} {
  func.func @_angle_resnet_kernel(%arg0: i32, %arg1: memref<8x128xf32, #tpu.memory_space<vmem>>, %arg2: memref<1x128x128xbf16, #tpu.memory_space<vmem>>, %arg3: memref<1x1x128xf32, #tpu.memory_space<vmem>>, %arg4: memref<1x128x128xbf16, #tpu.memory_space<vmem>>, %arg5: memref<1x1x128xf32, #tpu.memory_space<vmem>>, %arg6: memref<8x128xf32, #tpu.memory_space<vmem>>) attributes {dimension_semantics = [#tpu.dimension_semantics<parallel>], iteration_bounds = array<i64: 1>, scalar_prefetch = 0 : i64, scratch_operands = 0 : i64, tpu.core_type = #tpu.core_type<tc>, window_params = [{transform_indices = @transform_0, window_bounds = array<i64: 8, 128>}, {pipeline_mode = #tpu.pipeline_mode<synchronous>, transform_indices = @transform_1, window_bounds = array<i64: 1, 128, 128>}, {pipeline_mode = #tpu.pipeline_mode<synchronous>, transform_indices = @transform_2, window_bounds = array<i64: 1, 1, 128>}, {pipeline_mode = #tpu.pipeline_mode<synchronous>, transform_indices = @transform_3, window_bounds = array<i64: 1, 128, 128>}, {pipeline_mode = #tpu.pipeline_mode<synchronous>, transform_indices = @transform_4, window_bounds = array<i64: 1, 1, 128>}, {transform_indices = @transform_5, window_bounds = array<i64: 8, 128>}]} {
    %c0 = arith.constant 0 : index
    %c0_0 = arith.constant 0 : index
    %0 = vector.load %arg1[%c0, %c0_0] : memref<8x128xf32, #tpu.memory_space<vmem>>, vector<8x128xf32>
    %cst = arith.constant 0.000000e+00 : f32
    %1 = vector.broadcast %cst : f32 to vector<8x128xf32>
    %2 = arith.maximumf %0, %1 : vector<8x128xf32>
    %3 = arith.truncf %2 : vector<8x128xf32> to vector<8x128xbf16>
    %c0_1 = arith.constant 0 : index
    %c0_2 = arith.constant 0 : index
    %c0_3 = arith.constant 0 : index
    %4 = vector.load %arg2[%c0_1, %c0_2, %c0_3] : memref<1x128x128xbf16, #tpu.memory_space<vmem>>, vector<1x128x128xbf16>
    %5 = vector.shape_cast %4 : vector<1x128x128xbf16> to vector<128x128xbf16>
    %cst_4 = arith.constant dense<0.000000e+00> : vector<8x128xf32>
    %6 = tpu.matmul %3, %5, %cst_4 {dimension_numbers = #tpu.dot_dimension_numbers<[1], [0], [0], [1], [0, 0, 1, 1], [], []>} : vector<8x128xbf16>, vector<128x128xbf16>, vector<8x128xf32> -> vector<8x128xf32>
    %c0_5 = arith.constant 0 : index
    %c0_6 = arith.constant 0 : index
    %c0_7 = arith.constant 0 : index
    %7 = vector.load %arg3[%c0_5, %c0_6, %c0_7] : memref<1x1x128xf32, #tpu.memory_space<vmem>>, vector<1x1x128xf32>
    %8 = vector.shape_cast %7 : vector<1x1x128xf32> to vector<1x128xf32>
    %9 = vector.broadcast %8 : vector<1x128xf32> to vector<8x128xf32>
    %10 = arith.addf %6, %9 : vector<8x128xf32>
    %cst_8 = arith.constant 0.000000e+00 : f32
    %11 = vector.broadcast %cst_8 : f32 to vector<8x128xf32>
    %12 = arith.maximumf %10, %11 : vector<8x128xf32>
    %13 = arith.truncf %12 : vector<8x128xf32> to vector<8x128xbf16>
    %c0_9 = arith.constant 0 : index
    %c0_10 = arith.constant 0 : index
    %c0_11 = arith.constant 0 : index
    %14 = vector.load %arg4[%c0_9, %c0_10, %c0_11] : memref<1x128x128xbf16, #tpu.memory_space<vmem>>, vector<1x128x128xbf16>
    %15 = vector.shape_cast %14 : vector<1x128x128xbf16> to vector<128x128xbf16>
    %cst_12 = arith.constant dense<0.000000e+00> : vector<8x128xf32>
    %16 = tpu.matmul %13, %15, %cst_12 {dimension_numbers = #tpu.dot_dimension_numbers<[1], [0], [0], [1], [0, 0, 1, 1], [], []>} : vector<8x128xbf16>, vector<128x128xbf16>, vector<8x128xf32> -> vector<8x128xf32>
    %c0_13 = arith.constant 0 : index
    %c0_14 = arith.constant 0 : index
    %c0_15 = arith.constant 0 : index
    %17 = vector.load %arg5[%c0_13, %c0_14, %c0_15] : memref<1x1x128xf32, #tpu.memory_space<vmem>>, vector<1x1x128xf32>
    %18 = vector.shape_cast %17 : vector<1x1x128xf32> to vector<1x128xf32>
    %19 = vector.broadcast %18 : vector<1x128xf32> to vector<8x128xf32>
    %20 = arith.addf %16, %19 : vector<8x128xf32>
    %21 = arith.addf %20, %0 : vector<8x128xf32>
    %c0_16 = arith.constant 0 : index
    %c0_17 = arith.constant 0 : index
    %22 = vector.load %arg6[%c0_16, %c0_17] : memref<8x128xf32, #tpu.memory_space<vmem>>, vector<8x128xf32>
    tpu.vector_store %arg6[%c0_16, %c0_17], %21 {strides = array<i32>} : memref<8x128xf32, #tpu.memory_space<vmem>>, vector<8x128xf32>,
    return
  }
  func.func @transform_0(%arg0: i32) -> (i32, i32) {
    %c0_i32 = arith.constant 0 : i32
    %c0_i32_0 = arith.constant 0 : i32
    return %arg0, %c0_i32 : i32, i32
  }
  func.func @transform_1(%arg0: i32) -> (i32, i32, i32) {
    %c0_i32 = arith.constant 0 : i32
    %c0_i32_0 = arith.constant 0 : i32
    %c0_i32_1 = arith.constant 0 : i32
    %c0_i32_2 = arith.constant 0 : i32
    return %c0_i32, %c0_i32_0, %c0_i32_1 : i32, i32, i32
  }
  func.func @transform_2(%arg0: i32) -> (i32, i32, i32) {
    %c0_i32 = arith.constant 0 : i32
    %c0_i32_0 = arith.constant 0 : i32
    %c0_i32_1 = arith.constant 0 : i32
    %c0_i32_2 = arith.constant 0 : i32
    return %c0_i32, %c0_i32_0, %c0_i32_1 : i32, i32, i32
  }
  func.func @transform_3(%arg0: i32) -> (i32, i32, i32) {
    %c0_i32 = arith.constant 0 : i32
    %c0_i32_0 = arith.constant 0 : i32
    %c0_i32_1 = arith.constant 0 : i32
    %c0_i32_2 = arith.constant 0 : i32
    return %c0_i32, %c0_i32_0, %c0_i32_1 : i32, i32, i32
  }
  func.func @transform_4(%arg0: i32) -> (i32, i32, i32) {
    %c0_i32 = arith.constant 0 : i32
    %c0_i32_0 = arith.constant 0 : i32
    %c0_i32_1 = arith.constant 0 : i32
    %c0_i32_2 = arith.constant 0 : i32
    return %c0_i32, %c0_i32_0, %c0_i32_1 : i32, i32, i32
  }
  func.func @transform_5(%arg0: i32) -> (i32, i32) {
    %c0_i32 = arith.constant 0 : i32
    %c0_i32_0 = arith.constant 0 : i32
    return %arg0, %c0_i32 : i32, i32
  }
}

</mosaic_0001>

<llo_original>
// kernel: angle_resnet_blocks.1
$region0: #{angle_resnet_blocks.1}
  #allocation0 [shape = 'u32[]', space=smem, size = 0x4, offset = 0x4, fixed_abs, tag = 'smem constant byte address 0x4 - core index']
  #allocation1 [shape = 'u32[144,128]{1,0:T(1,128)}', space=vmem, size = 0x12000, scoped, tag = 'internal scratch']
  %s0 = inlined_call_operand.vmem [shape: f32[8,128], index: 0, kind: input, shape index: {}]
  %s1 = inlined_call_operand.vmem [shape: bf16[1,128,128], index: 1, kind: input, shape index: {}]
  %s2 = inlined_call_operand.vmem [shape: f32[1,1,128], index: 2, kind: input, shape index: {}]
  %s3 = inlined_call_operand.hbm [shape: bf16[1,128,128], index: 3, kind: input, shape index: {}]
  %s4 = inlined_call_operand.vmem [shape: f32[1,1,128], index: 4, kind: input, shape index: {}]
  %s5 = inlined_call_operand.vmem [shape: f32[8,128], index: 5, kind: output, shape index: {}]
  %s6 = sld [smem:[#allocation0]]
  $region34: #{angle_resnet_blocks.1} parent=0
    _
  %s8 = ssub.s32 1, %s6
  %s9 = scalar_select 0, %s8, %s6
  $region1: #{angle_resnet_blocks.1} parent=0
    #allocation2 [shape = 'u8[32768]{0}', space=vmem, size = 0x8000, scoped, tag = 'input window, operand 3, single buffered']
    #allocation3 [shape = 's32[1]{0}', space=sflag, size = 0x4, scoped, tag = 'scoped memory for angle_resnet_blocks.1']
    %10 = vsyncpa [#allocation3], 0
    // Predicated region
    $region2: #{angle_resnet_blocks.1} parent=1 // pred_check
      _
    $region3: #{angle_resnet_blocks.1} parent=1 // pred_check_branch
      %12 = sbr.rel (0) target = $region5
    $region4: #{angle_resnet_blocks.1} parent=1 // pred_region
      _
    $region5: #{angle_resnet_blocks.1} parent=1 // pred_fallthru
      _
    // Predicated region
    $region6: #{angle_resnet_blocks.1} parent=1 // pred_check
      _
    $region7: #{angle_resnet_blocks.1} parent=1 // pred_check_branch
      %14 = sbr.rel (0) target = $region9
    $region8: #{angle_resnet_blocks.1} parent=1 // pred_region
      _
    $region9: #{angle_resnet_blocks.1} parent=1 // pred_fallthru
      _
    // Predicated region
    $region10: #{angle_resnet_blocks.1} parent=1 // pred_check
      _
    $region11: #{angle_resnet_blocks.1} parent=1 // pred_check_branch
      %16 = sbr.rel (0) target = $region13
    $region12: #{angle_resnet_blocks.1} parent=1 // pred_region
      _
    $region13: #{angle_resnet_blocks.1} parent=1 // pred_fallthru
      _
    // Predicated region
    $region14: #{angle_resnet_blocks.1} parent=1 // pred_check
      _
    $region15: #{angle_resnet_blocks.1} parent=1 // pred_check_branch
      %18 = sbr.rel (0) target = $region17
    $region16: #{angle_resnet_blocks.1} parent=1 // pred_region
      %s20 = ssub.s32 1024, 1024
      %21 = vsyncadd [#allocation3], %s20
      %s22 = sshll.u32 [#allocation2], 4
      %s23 = int_to_ptr.vmem [resolvable:$true] %s22
      %28 = dma.hbm_to_vmem [thread:$0]  %s3, 1024, %s23, [#allocation3], 64, 64, 4
    $region17: #{angle_resnet_blocks.1} parent=1 // pred_fallthru
      _
    // Predicated region
    $region18: #{angle_resnet_blocks.1} parent=1 // pred_check
      _
    $region19: #{angle_resnet_blocks.1} parent=1 // pred_check_branch
      %30 = sbr.rel (0) target = $region21
    $region20: #{angle_resnet_blocks.1} parent=1 // pred_region
      _
    $region21: #{angle_resnet_blocks.1} parent=1 // pred_fallthru
      _
    // Predicated region
    $region22: #{angle_resnet_blocks.1} parent=1 // pred_check
      _
    $region23: #{angle_resnet_blocks.1} parent=1 // pred_check_branch
      %32 = sbr.rel (0) target = $region25
    $region24: #{angle_resnet_blocks.1} parent=1 // pred_region
      %33 = dma.done [#allocation3], 1024
    $region25: #{angle_resnet_blocks.1} parent=1 // pred_fallthru
      _
    %v35 = vld [vmem:[%s0] sm:$0xff]
    %v36 = vmax.f32 %v35, 0.0
    %v37 = vpack.c.bf16 %v36, %v36
    %v38 = vld [vmem:[%s1] sm:$0xf]
    %v39 = vld [vmem:[%s1 + $0x4] sm:$0xf]
    %v40 = vld [vmem:[%s1 + $0x8] sm:$0xf]
    %v41 = vld [vmem:[%s1 + $0xc] sm:$0xf]
    %v42 = vld [vmem:[%s1 + $0x10] sm:$0xf]
    %v43 = vld [vmem:[%s1 + $0x14] sm:$0xf]
    %v44 = vld [vmem:[%s1 + $0x18] sm:$0xf]
    %v45 = vld [vmem:[%s1 + $0x1c] sm:$0xf]
    %v46 = vld [vmem:[%s1 + $0x20] sm:$0xf]
    %v47 = vld [vmem:[%s1 + $0x24] sm:$0xf]
    %v48 = vld [vmem:[%s1 + $0x28] sm:$0xf]
    %v49 = vld [vmem:[%s1 + $0x2c] sm:$0xf]
    %v50 = vld [vmem:[%s1 + $0x30] sm:$0xf]
    %v51 = vld [vmem:[%s1 + $0x34] sm:$0xf]
    %v52 = vld [vmem:[%s1 + $0x38] sm:$0xf]
    %v53 = vld [vmem:[%s1 + $0x3c] sm:$0xf]
    %v54 = vld [vmem:[%s2] sm:$0x1]
    %v56 = vlaneseq
    %v57 = vshrl.u32 %v56, 7
    %v58 = vsub.s32 0, %v57
    %v59 = vrot.slane %v54, %v58
    %v77 = vunpack.c.l.b16 %v38
    %v78 = vunpack.c.l.b16 %v39
    %v79 = vunpack.c.l.b16 %v40
    %v80 = vunpack.c.l.b16 %v41
    %v81 = vunpack.c.l.b16 %v42
    %v82 = vunpack.c.l.b16 %v43
    %v83 = vunpack.c.l.b16 %v44
    %v84 = vunpack.c.l.b16 %v45
    %v85 = vunpack.c.l.b16 %v46
    %v86 = vunpack.c.l.b16 %v47
    %v87 = vunpack.c.l.b16 %v48
    %v88 = vunpack.c.l.b16 %v49
    %v89 = vunpack.c.l.b16 %v50
    %v90 = vunpack.c.l.b16 %v51
    %v91 = vunpack.c.l.b16 %v52
    %v92 = vunpack.c.l.b16 %v53
    %v93 = vpack.c.b16 %v78, %v77
    %v94 = vpack.c.b16 %v80, %v79
    %v95 = vpack.c.b16 %v82, %v81
    %v96 = vpack.c.b16 %v84, %v83
    %v97 = vpack.c.b16 %v86, %v85
    %v98 = vpack.c.b16 %v88, %v87
    %v99 = vpack.c.b16 %v90, %v89
    %v100 = vpack.c.b16 %v92, %v91
    %109 = vmatprep.subr.bf16.mxu0 0
    %110 = vmatpush1.bf16.msra.mxu0 %v93
    %111 = vmatprep.subr.bf16.mxu0 0
    %112 = vmatpush1.bf16.msra.mxu0 %v94
    %113 = vmatprep.subr.bf16.mxu0 0
    %114 = vmatpush1.bf16.msra.mxu0 %v95
    %115 = vmatprep.subr.bf16.mxu0 0
    %116 = vmatpush1.bf16.msra.mxu0 %v96
    %117 = vmatprep.subr.bf16.mxu0 0
    %118 = vmatpush1.bf16.msra.mxu0 %v97
    %119 = vmatprep.subr.bf16.mxu0 0
    %120 = vmatpush1.bf16.msra.mxu0 %v98
    %121 = vmatprep.subr.bf16.mxu0 0
    %122 = vmatpush1.bf16.msra.mxu0 %v99
    %123 = vmatprep.subr.bf16.mxu0 0
    %124 = vmatpush1.bf16.msra.mxu0 %v100
    %125 = vmatprep.subr.bf16.mxu0 0
    %126 = vmatpush1.bf16.msra.mxu0 0
    %127 = vmatprep.subr.bf16.mxu0 0
    %128 = vmatpush1.bf16.msra.mxu0 0
    %129 = vmatprep.subr.bf16.mxu0 0
    %130 = vmatpush1.bf16.msra.mxu0 0
    %131 = vmatprep.subr.bf16.mxu0 0
    %132 = vmatpush1.bf16.msra.mxu0 0
    %133 = vmatprep.subr.bf16.mxu0 0
    %134 = vmatpush1.bf16.msra.mxu0 0
    %135 = vmatprep.subr.bf16.mxu0 0
    %136 = vmatpush1.bf16.msra.mxu0 0
    %137 = vmatprep.subr.bf16.mxu0 0
    %138 = vmatpush1.bf16.msra.mxu0 0
    %139 = vmatprep.subr.bf16.mxu0 0
    %140 = vmatpush1.bf16.msra.mxu0 0
    %141 = vmatprep.mubr.bf16.mxu0 0
    %142 = vmatmul.mubr.bf16.gmra.mrb[0].mxu0 %v37
    %v143 = vpop.f32.mrb[0].mxu0
    %v144 = vadd.f32 %v59, %v143
    %v145 = vpop.f32.mrb[0].mxu0
    %v146 = vpop.f32.mrb[0].mxu0
    %v147 = vpop.f32.mrb[0].mxu0
    %148 = vdwg.mxu0
    %v149 = vmax.f32 %v144, 0.0
    %v150 = vpack.c.bf16 %v149, %v149
    %v151 = vld [vmem:[#allocation2] sm:$0xf]
    %v152 = vld [vmem:[#allocation2 + $0x4] sm:$0xf]
    %v153 = vld [vmem:[#allocation2 + $0x8] sm:$0xf]
    %v154 = vld [vmem:[#allocation2 + $0xc] sm:$0xf]
    %v155 = vld [vmem:[#allocation2 + $0x10] sm:$0xf]
    %v156 = vld [vmem:[#allocation2 + $0x14] sm:$0xf]
    %v157 = vld [vmem:[#allocation2 + $0x18] sm:$0xf]
    %v158 = vld [vmem:[#allocation2 + $0x1c] sm:$0xf]
    %v159 = vld [vmem:[#allocation2 + $0x20] sm:$0xf]
    %v160 = vld [vmem:[#allocation2 + $0x24] sm:$0xf]
    %v161 = vld [vmem:[#allocation2 + $0x28] sm:$0xf]
    %v162 = vld [vmem:[#allocation2 + $0x2c] sm:$0xf]
    %v163 = vld [vmem:[#allocation2 + $0x30] sm:$0xf]
    %v164 = vld [vmem:[#allocation2 + $0x34] sm:$0xf]
    %v165 = vld [vmem:[#allocation2 + $0x38] sm:$0xf]
    %v166 = vld [vmem:[#allocation2 + $0x3c] sm:$0xf]
    %v167 = vld [vmem:[%s4] sm:$0x1]
    %v169 = vlaneseq
    %v170 = vshrl.u32 %v169, 7
    %v171 = vsub.s32 0, %v170
    %v172 = vrot.slane %v167, %v171
    %v190 = vunpack.c.l.b16 %v151
    %v191 = vunpack.c.l.b16 %v152
    %v192 = vunpack.c.l.b16 %v153
    %v193 = vunpack.c.l.b16 %v154
    %v194 = vunpack.c.l.b16 %v155
    %v195 = vunpack.c.l.b16 %v156
    %v196 = vunpack.c.l.b16 %v157
    %v197 = vunpack.c.l.b16 %v158
    %v198 = vunpack.c.l.b16 %v159
    %v199 = vunpack.c.l.b16 %v160
    %v200 = vunpack.c.l.b16 %v161
    %v201 = vunpack.c.l.b16 %v162
    %v202 = vunpack.c.l.b16 %v163
    %v203 = vunpack.c.l.b16 %v164
    %v204 = vunpack.c.l.b16 %v165
    %v205 = vunpack.c.l.b16 %v166
    %v206 = vpack.c.b16 %v191, %v190
    %v207 = vpack.c.b16 %v193, %v192
    %v208 = vpack.c.b16 %v195, %v194
    %v209 = vpack.c.b16 %v197, %v196
    %v210 = vpack.c.b16 %v199, %v198
    %v211 = vpack.c.b16 %v201, %v200
    %v212 = vpack.c.b16 %v203, %v202
    %v213 = vpack.c.b16 %v205, %v204
    %222 = vmatprep.subr.bf16.mxu0 0
    %223 = vmatpush1.bf16.msra.mxu0 %v206
    %224 = vmatprep.subr.bf16.mxu0 0
    %225 = vmatpush1.bf16.msra.mxu0 %v207
    %226 = vmatprep.subr.bf16.mxu0 0
    %227 = vmatpush1.bf16.msra.mxu0 %v208
    %228 = vmatprep.subr.bf16.mxu0 0
    %229 = vmatpush1.bf16.msra.mxu0 %v209
    %230 = vmatprep.subr.bf16.mxu0 0
    %231 = vmatpush1.bf16.msra.mxu0 %v210
    %232 = vmatprep.subr.bf16.mxu0 0
    %233 = vmatpush1.bf16.msra.mxu0 %v211
    %234 = vmatprep.subr.bf16.mxu0 0
    %235 = vmatpush1.bf16.msra.mxu0 %v212
    %236 = vmatprep.subr.bf16.mxu0 0
    %237 = vmatpush1.bf16.msra.mxu0 %v213
    %238 = vmatprep.subr.bf16.mxu0 0
    %239 = vmatpush1.bf16.msra.mxu0 0
    %240 = vmatprep.subr.bf16.mxu0 0
    %241 = vmatpush1.bf16.msra.mxu0 0
    %242 = vmatprep.subr.bf16.mxu0 0
    %243 = vmatpush1.bf16.msra.mxu0 0
    %244 = vmatprep.subr.bf16.mxu0 0
    %245 = vmatpush1.bf16.msra.mxu0 0
    %246 = vmatprep.subr.bf16.mxu0 0
    %247 = vmatpush1.bf16.msra.mxu0 0
    %248 = vmatprep.subr.bf16.mxu0 0
    %249 = vmatpush1.bf16.msra.mxu0 0
    %250 = vmatprep.subr.bf16.mxu0 0
    %251 = vmatpush1.bf16.msra.mxu0 0
    %252 = vmatprep.subr.bf16.mxu0 0
    %253 = vmatpush1.bf16.msra.mxu0 0
    %254 = vmatprep.mubr.bf16.mxu0 0
    %255 = vmatmul.mubr.bf16.gmra.mrb[0].mxu0 %v150
    %v256 = vpop.f32.mrb[0].mxu0
    %v257 = vadd.f32 %v172, %v256
    %v258 = vpop.f32.mrb[0].mxu0
    %v259 = vpop.f32.mrb[0].mxu0
    %v260 = vpop.f32.mrb[0].mxu0
    %261 = vdwg.mxu0
    %v262 = vadd.f32 %v257, %v35
    %263 = vst [vmem:[%s5] sm:$0xff] %v262
    // Predicated region
    $region26: #{angle_resnet_blocks.1} parent=1 // pred_check
      _
    $region27: #{angle_resnet_blocks.1} parent=1 // pred_check_branch
      %265 = sbr.rel (0) target = $region29
    $region28: #{angle_resnet_blocks.1} parent=1 // pred_region
      _
    $region29: #{angle_resnet_blocks.1} parent=1 // pred_fallthru
      _
    // Predicated region
    $region30: #{angle_resnet_blocks.1} parent=1 // pred_check
      _
    $region31: #{angle_resnet_blocks.1} parent=1 // pred_check_branch
      %267 = sbr.rel (0) target = $region33
    $region32: #{angle_resnet_blocks.1} parent=1 // pred_region
      _
    $region33: #{angle_resnet_blocks.1} parent=1 // pred_fallthru
      _
    %268 = vsyncpa [#allocation3], 1

</llo_original>
